<compile_context>
chip_gen: v5e
topology: v5e:2x2
jax: 0.10.0
libtpu: 0.0.40
codegen_flags: <defaults>
</compile_context>

<pallas_src>
import functools

import jax
import jax.numpy as jnp
from jax import lax
from jax.experimental import pallas as pl
from jax.experimental.pallas import tpu as pltpu


def _pick_tile(n, max_tile):
    """Largest divisor of n that is a multiple of 8 and <= max_tile (else n)."""
    start = (min(max_tile, n) // 8) * 8
    for cand in range(start, 0, -8):
        if n % cand == 0:
            return cand
    return n


def _feat_block(d, half):
    """Feature-dim block: stream only the first half when lane-aligned."""
    if half % 128 == 0:
        return half, False           # DMA just the half we use
    return d, True                   # load full D, slice the VMEM tile


# ----------------------------------------------------------------------------
# Kernel 1: N-pair contrastive loss, streamed over positive/column tiles.
#   logits = anchor_half @ positive_half.T
#   per_example[b] = lse[b] * sum_j t[b,j] - sum_j t[b,j] * logits[b,j]
#   loss = mean_b per_example[b]        (size_average=True)
# ----------------------------------------------------------------------------
def _npair_kernel(a_ref, p_ref, t_ref, out_ref,
                  m_sc, l_sc, tdot_sc, tsum_sc, *, half, need_slice):
    j = pl.program_id(1)

    @pl.when(j == 0)
    def _():
        m_sc[...] = jnp.full(m_sc.shape, -jnp.inf, m_sc.dtype)
        l_sc[...] = jnp.zeros(l_sc.shape, l_sc.dtype)
        tdot_sc[...] = jnp.zeros(tdot_sc.shape, tdot_sc.dtype)
        tsum_sc[...] = jnp.zeros(tsum_sc.shape, tsum_sc.dtype)

    a = a_ref[...]                                        # [tm, feat]
    p = p_ref[...]                                        # [tn, feat]
    if need_slice:
        a = a[:, :half]
        p = p[:, :half]

    # anchor @ positive.T as a last-dim contraction: no transpose, native
    # (possibly bf16) operands feed the MXU with f32 accumulation.
    logits = lax.dot_general(a, p, (((1,), (1,)), ((), ())),
                             preferred_element_type=jnp.float32)   # [tm, tn]
    t = t_ref[...].astype(jnp.float32)                             # [tm, tn]

    # Online (flash-style) logsumexp across column tiles.
    m_prev = m_sc[...]
    m_new = jnp.maximum(m_prev, jnp.max(logits, axis=-1, keepdims=True))
    alpha = jnp.exp(m_prev - m_new)
    l_sc[...] = alpha * l_sc[...] + jnp.sum(jnp.exp(logits - m_new),
                                            axis=-1, keepdims=True)
    m_sc[...] = m_new

    tdot_sc[...] += jnp.sum(t * logits, axis=-1, keepdims=True)
    tsum_sc[...] += jnp.sum(t, axis=-1, keepdims=True)

    @pl.when(j == pl.num_programs(1) - 1)
    def _():
        lse = m_sc[...] + jnp.log(l_sc[...])
        out_ref[...] = lse * tsum_sc[...] - tdot_sc[...]   # [tm, 1]


def _npair_loss(anchor, positive, target, *, max_tile=256):
    B, D = anchor.shape
    half = D // 2
    tm = _pick_tile(B, max_tile)
    tn = _pick_tile(B, max_tile)
    grid = (B // tm, B // tn)
    feat, need_slice = _feat_block(D, half)

    isz_e = jnp.dtype(anchor.dtype).itemsize
    isz_t = jnp.dtype(target.dtype).itemsize
    vmem_bytes = (2 * tm * feat * isz_e        # anchor tiles (double-buffered)
                  + 2 * tn * feat * isz_e      # positive tiles
                  + 2 * tm * tn * isz_t        # target tiles
                  + 2 * tm * 4                 # output block
                  + 4 * tm * 4                 # scratch
                  + 6 * tm * tn * 4)           # logits / exp temporaries
    vmem_limit = min(max(2 * vmem_bytes, 8 << 20), 64 << 20)

    kernel = functools.partial(_npair_kernel, half=half, need_slice=need_slice)
    per_example = pl.pallas_call(
        kernel,
        out_shape=jax.ShapeDtypeStruct((B, 1), jnp.float32),
        grid_spec=pltpu.PrefetchScalarGridSpec(
            num_scalar_prefetch=0,
            grid=grid,
            in_specs=[
                pl.BlockSpec((tm, feat), lambda i, j: (i, 0)),   # anchor rows
                pl.BlockSpec((tn, feat), lambda i, j: (j, 0)),   # positive rows
                pl.BlockSpec((tm, tn), lambda i, j: (i, j)),     # target tile
            ],
            out_specs=pl.BlockSpec((tm, 1), lambda i, j: (i, 0)),
            scratch_shapes=[pltpu.VMEM((tm, 1), jnp.float32)] * 4,
        ),
        compiler_params=pltpu.CompilerParams(
            dimension_semantics=("parallel", "arbitrary"),
            vmem_limit_bytes=vmem_limit),
    )(anchor, positive, target)
    return jnp.sum(per_example) / jnp.float32(B)


# ----------------------------------------------------------------------------
# Kernel 2: triplet margin loss on cosine similarity (row-tiled, pipelined).
# ----------------------------------------------------------------------------
def _triplet_kernel(a_ref, p_ref, n_ref, out_ref, *, half, need_slice):
    a = a_ref[...]
    p = p_ref[...]
    n = n_ref[...]
    if need_slice:
        a = a[:, :half]
        p = p[:, :half]
        n = n[:, :half]
    a = a.astype(jnp.float32)
    p = p.astype(jnp.float32)
    n = n.astype(jnp.float32)

    # F.cosine_similarity clamps each norm at eps=1e-8:
    #   cos = <x,y> * rsqrt(max(|x|^2, eps^2)) * rsqrt(max(|y|^2, eps^2))
    # rsqrt runs on the EUP slot (co-issues with the VPU reductions).
    # TODO(synk): very old torch clamped the product of norms instead; only
    # differs for near-zero vectors.
    eps2 = jnp.float32(1e-16)
    ap = jnp.sum(a * p, axis=-1, keepdims=True)           # [tm, 1]
    an = jnp.sum(a * n, axis=-1, keepdims=True)
    aa = jnp.sum(a * a, axis=-1, keepdims=True)           # anchor norm^2, once
    pp = jnp.sum(p * p, axis=-1, keepdims=True)
    nn = jnp.sum(n * n, axis=-1, keepdims=True)

    inv_a = lax.rsqrt(jnp.maximum(aa, eps2))
    pos = ap * inv_a * lax.rsqrt(jnp.maximum(pp, eps2))
    neg = an * inv_a * lax.rsqrt(jnp.maximum(nn, eps2))

    out_ref[...] = jnp.maximum(jnp.float32(0.3) - (pos - neg), jnp.float32(0.0))


def _triplet_loss(anchor, positive, negative, *, max_tile=512):
    B, D = anchor.shape
    half = D // 2
    tm = _pick_tile(B, max_tile)
    feat, need_slice = _feat_block(D, half)

    isz = jnp.dtype(anchor.dtype).itemsize
    vmem_bytes = (3 * 2 * tm * feat * isz      # a/p/n tiles, double-buffered
                  + 2 * tm * 4                 # output block
                  + 8 * tm * feat * 4)         # f32 temporaries
    vmem_limit = min(max(2 * vmem_bytes, 8 << 20), 64 << 20)

    kernel = functools.partial(_triplet_kernel, half=half, need_slice=need_slice)
    spec = pl.BlockSpec((tm, feat), lambda i: (i, 0))
    per_example = pl.pallas_call(
        kernel,
        out_shape=jax.ShapeDtypeStruct((B, 1), jnp.float32),
        grid=(B // tm,),
        in_specs=[spec, spec, spec],
        out_specs=pl.BlockSpec((tm, 1), lambda i: (i, 0)),
        compiler_params=pltpu.CompilerParams(
            dimension_semantics=("parallel",),
            vmem_limit_bytes=vmem_limit),
    )(anchor, positive, negative)
    return jnp.mean(per_example)


def contrastive_loss(anchor, positive, target=None, negative=None, *, triplet=False):
    """Forward pass of ContrastiveLoss (N-pair if triplet=False, else triplet margin)."""
    if not triplet:
        assert target is not None
        return _npair_loss(anchor, positive, target)
    assert negative is not None
    return _triplet_loss(anchor, positive, negative)


# ----------------------------------------------------------------------------
# Reference (pure JAX) for sanity check
# ----------------------------------------------------------------------------
def _ref_npair(anchor, positive, target):
    half = anchor.shape[1] // 2
    a, p = anchor[:, :half], positive[:, :half]
    logits = a @ p.T
    log_sm = jax.nn.log_softmax(logits, axis=-1)
    return jnp.mean(jnp.sum(-target * log_sm, axis=-1))


def _ref_triplet(anchor, positive, negative):
    half = anchor.shape[1] // 2
    a, p, n = anchor[:, :half], positive[:, :half], negative[:, :half]

    def cos(x, y):
        nx = jnp.maximum(jnp.linalg.norm(x, axis=-1), 1e-8)
        ny = jnp.maximum(jnp.linalg.norm(y, axis=-1), 1e-8)
        return jnp.sum(x * y, -1) / (nx * ny)

    return jnp.mean(jnp.maximum(0.3 - (cos(a, p) - cos(a, n)), 0.0))


if __name__ == "__main__":
    key = jax.random.PRNGKey(0)
    k1, k2, k3, k4, k5, k6 = jax.random.split(key, 6)

    # --- small config (half not lane-aligned -> in-kernel slice path) ---
    B, D = 8, 64  # half_size = 32
    anchor = jax.random.normal(k1, (B, D), dtype=jnp.float32)
    positive = jax.random.normal(k2, (B, D), dtype=jnp.float32)
    negative = jax.random.normal(k3, (B, D), dtype=jnp.float32)
    target = jnp.eye(B, dtype=jnp.float32)  # typical N-pair target

    loss_np = jax.block_until_ready(
        contrastive_loss(anchor, positive, target=target, triplet=False))
    ref_np = _ref_npair(anchor, positive, target)
    assert jnp.allclose(loss_np, ref_np, rtol=1e-5, atol=1e-5), (loss_np, ref_np)

    loss_tr = jax.block_until_ready(
        contrastive_loss(anchor, positive, negative=negative, triplet=True))
    ref_tr = _ref_triplet(anchor, positive, negative)
    assert jnp.allclose(loss_tr, ref_tr, rtol=1e-5, atol=1e-5), (loss_tr, ref_tr)

    # --- second config: lane-aligned half (half-feature DMA) + multi-tile grid
    #     (exercises the streaming logsumexp across column tiles) ---
    B2, D2 = 16, 256  # half_size = 128
    anchor2 = jax.random.normal(k4, (B2, D2), dtype=jnp.float32)
    positive2 = jax.random.normal(k5, (B2, D2), dtype=jnp.float32)
    negative2 = jax.random.normal(k6, (B2, D2), dtype=jnp.float32)
    target2 = jax.nn.softmax(
        jax.random.normal(jax.random.PRNGKey(7), (B2, B2)), axis=-1)

    loss_np2 = jax.block_until_ready(
        _npair_loss(anchor2, positive2, target2, max_tile=8))   # 2x2 grid
    ref_np2 = _ref_npair(anchor2, positive2, target2)
    assert jnp.allclose(loss_np2, ref_np2, rtol=1e-5, atol=1e-5), (loss_np2, ref_np2)

    loss_tr2 = jax.block_until_ready(
        _triplet_loss(anchor2, positive2, negative2, max_tile=8))  # 2 row tiles
    ref_tr2 = _ref_triplet(anchor2, positive2, negative2)
    assert jnp.allclose(loss_tr2, ref_tr2, rtol=1e-5, atol=1e-5), (loss_tr2, ref_tr2)

    print("KERNEL_OK")
</pallas_src>

<mosaic_0001>
module attributes {stable_mosaic.version = 11 : i64} {
  func.func @_npair_kernel(%arg0: i32, %arg1: i32, %arg2: memref<8x64xf32, #tpu.memory_space<vmem>>, %arg3: memref<8x64xf32, #tpu.memory_space<vmem>>, %arg4: memref<8x8xf32, #tpu.memory_space<vmem>>, %arg5: memref<8x1xf32, #tpu.memory_space<vmem>>, %arg6: memref<8x1xf32, #tpu.memory_space<vmem>>, %arg7: memref<8x1xf32, #tpu.memory_space<vmem>>, %arg8: memref<8x1xf32, #tpu.memory_space<vmem>>, %arg9: memref<8x1xf32, #tpu.memory_space<vmem>>) attributes {dimension_semantics = [#tpu.dimension_semantics<parallel>, #tpu.dimension_semantics<arbitrary>], iteration_bounds = array<i64: 1, 1>, scalar_prefetch = 0 : i64, scratch_operands = 4 : i64, tpu.core_type = #tpu.core_type<tc>, window_params = [{transform_indices = @transform_0, window_bounds = array<i64: 8, 64>}, {transform_indices = @transform_1, window_bounds = array<i64: 8, 64>}, {transform_indices = @transform_2, window_bounds = array<i64: 8, 8>}, {transform_indices = @transform_3, window_bounds = array<i64: 8, 1>}]} {
    %c0_i32 = arith.constant 0 : i32
    %0 = arith.cmpi eq, %arg1, %c0_i32 : i32
    %1 = arith.extui %0 : i1 to i32
    %c0_i32_0 = arith.constant 0 : i32
    %2 = arith.cmpi ne, %1, %c0_i32_0 : i32
    scf.if %2 {
      %cst_28 = arith.constant 0xFF800000 : f32
      %39 = vector.broadcast %cst_28 : f32 to vector<8x1xf32>
      %c0_29 = arith.constant 0 : index
      %c0_30 = arith.constant 0 : index
      %40 = vector.load %arg6[%c0_29, %c0_30] : memref<8x1xf32, #tpu.memory_space<vmem>>, vector<8x1xf32>
      tpu.vector_store %arg6[%c0_29, %c0_30], %39 {strides = array<i32>} : memref<8x1xf32, #tpu.memory_space<vmem>>, vector<8x1xf32>,
      %cst_31 = arith.constant 0.000000e+00 : f32
      %41 = vector.broadcast %cst_31 : f32 to vector<8x1xf32>
      %c0_32 = arith.constant 0 : index
      %c0_33 = arith.constant 0 : index
      %42 = vector.load %arg7[%c0_32, %c0_33] : memref<8x1xf32, #tpu.memory_space<vmem>>, vector<8x1xf32>
      tpu.vector_store %arg7[%c0_32, %c0_33], %41 {strides = array<i32>} : memref<8x1xf32, #tpu.memory_space<vmem>>, vector<8x1xf32>,
      %cst_34 = arith.constant 0.000000e+00 : f32
      %43 = vector.broadcast %cst_34 : f32 to vector<8x1xf32>
      %c0_35 = arith.constant 0 : index
      %c0_36 = arith.constant 0 : index
      %44 = vector.load %arg8[%c0_35, %c0_36] : memref<8x1xf32, #tpu.memory_space<vmem>>, vector<8x1xf32>
      tpu.vector_store %arg8[%c0_35, %c0_36], %43 {strides = array<i32>} : memref<8x1xf32, #tpu.memory_space<vmem>>, vector<8x1xf32>,
      %cst_37 = arith.constant 0.000000e+00 : f32
      %45 = vector.broadcast %cst_37 : f32 to vector<8x1xf32>
      %c0_38 = arith.constant 0 : index
      %c0_39 = arith.constant 0 : index
      %46 = vector.load %arg9[%c0_38, %c0_39] : memref<8x1xf32, #tpu.memory_space<vmem>>, vector<8x1xf32>
      tpu.vector_store %arg9[%c0_38, %c0_39], %45 {strides = array<i32>} : memref<8x1xf32, #tpu.memory_space<vmem>>, vector<8x1xf32>,
    } else {
    }
    %c0 = arith.constant 0 : index
    %c0_1 = arith.constant 0 : index
    %3 = vector.load %arg2[%c0, %c0_1] : memref<8x64xf32, #tpu.memory_space<vmem>>, vector<8x64xf32>
    %c0_2 = arith.constant 0 : index
    %c0_3 = arith.constant 0 : index
    %4 = vector.load %arg3[%c0_2, %c0_3] : memref<8x64xf32, #tpu.memory_space<vmem>>, vector<8x64xf32>
    %5 = vector.extract_strided_slice %3 {offsets = [0, 0], sizes = [8, 32], strides = [1, 1]} : vector<8x64xf32> to vector<8x32xf32>
    %6 = vector.extract_strided_slice %4 {offsets = [0, 0], sizes = [8, 32], strides = [1, 1]} : vector<8x64xf32> to vector<8x32xf32>
    %cst = arith.constant dense<0.000000e+00> : vector<8x8xf32>
    %7 = tpu.matmul %5, %6, %cst {dimension_numbers = #tpu.dot_dimension_numbers<[1], [1], [0], [0], [0, 0, 1, 0], [], []>} : vector<8x32xf32>, vector<8x32xf32>, vector<8x8xf32> -> vector<8x8xf32>
    %c0_4 = arith.constant 0 : index
    %c0_5 = arith.constant 0 : index
    %8 = vector.load %arg4[%c0_4, %c0_5] : memref<8x8xf32, #tpu.memory_space<vmem>>, vector<8x8xf32>
    %c0_6 = arith.constant 0 : index
    %c0_7 = arith.constant 0 : index
    %9 = vector.load %arg6[%c0_6, %c0_7] : memref<8x1xf32, #tpu.memory_space<vmem>>, vector<8x1xf32>
    %cst_8 = arith.constant dense<0xFF800000> : vector<8xf32>
    %10 = vector.multi_reduction <maximumf>, %7, %cst_8 [1] : vector<8x8xf32> to vector<8xf32>
    %11 = vector.shape_cast %10 : vector<8xf32> to vector<8x1xf32>
    %12 = arith.maximumf %9, %11 : vector<8x1xf32>
    %13 = arith.subf %9, %12 : vector<8x1xf32>
    %14 = math.exp %13 : vector<8x1xf32>
    %c0_9 = arith.constant 0 : index
    %c0_10 = arith.constant 0 : index
    %15 = vector.load %arg7[%c0_9, %c0_10] : memref<8x1xf32, #tpu.memory_space<vmem>>, vector<8x1xf32>
    %16 = arith.mulf %14, %15 : vector<8x1xf32>
    %17 = vector.broadcast %12 : vector<8x1xf32> to vector<8x8xf32>
    %18 = arith.subf %7, %17 : vector<8x8xf32>
    %19 = math.exp %18 : vector<8x8xf32>
    %cst_11 = arith.constant dense<0.000000e+00> : vector<8xf32>
    %20 = vector.multi_reduction <add>, %19, %cst_11 [1] : vector<8x8xf32> to vector<8xf32>
    %21 = vector.shape_cast %20 : vector<8xf32> to vector<8x1xf32>
    %22 = arith.addf %16, %21 : vector<8x1xf32>
    %c0_12 = arith.constant 0 : index
    %c0_13 = arith.constant 0 : index
    %23 = vector.load %arg7[%c0_12, %c0_13] : memref<8x1xf32, #tpu.memory_space<vmem>>, vector<8x1xf32>
    tpu.vector_store %arg7[%c0_12, %c0_13], %22 {strides = array<i32>} : memref<8x1xf32, #tpu.memory_space<vmem>>, vector<8x1xf32>,
    %c0_14 = arith.constant 0 : index
    %c0_15 = arith.constant 0 : index
    %24 = vector.load %arg6[%c0_14, %c0_15] : memref<8x1xf32, #tpu.memory_space<vmem>>, vector<8x1xf32>
    tpu.vector_store %arg6[%c0_14, %c0_15], %12 {strides = array<i32>} : memref<8x1xf32, #tpu.memory_space<vmem>>, vector<8x1xf32>,
    %c0_16 = arith.constant 0 : index
    %c0_17 = arith.constant 0 : index
    %25 = vector.load %arg8[%c0_16, %c0_17] : memref<8x1xf32, #tpu.memory_space<vmem>>, vector<8x1xf32>
    %26 = arith.mulf %8, %7 : vector<8x8xf32>
    %cst_18 = arith.constant dense<0.000000e+00> : vector<8xf32>
    %27 = vector.multi_reduction <add>, %26, %cst_18 [1] : vector<8x8xf32> to vector<8xf32>
    %28 = vector.shape_cast %27 : vector<8xf32> to vector<8x1xf32>
    %29 = arith.addf %25, %28 : vector<8x1xf32>
    %c0_19 = arith.constant 0 : index
    %c0_20 = arith.constant 0 : index
    %30 = vector.load %arg8[%c0_19, %c0_20] : memref<8x1xf32, #tpu.memory_space<vmem>>, vector<8x1xf32>
    tpu.vector_store %arg8[%c0_19, %c0_20], %29 {strides = array<i32>} : memref<8x1xf32, #tpu.memory_space<vmem>>, vector<8x1xf32>,
    %c0_21 = arith.constant 0 : index
    %c0_22 = arith.constant 0 : index
    %31 = vector.load %arg9[%c0_21, %c0_22] : memref<8x1xf32, #tpu.memory_space<vmem>>, vector<8x1xf32>
    %cst_23 = arith.constant dense<0.000000e+00> : vector<8xf32>
    %32 = vector.multi_reduction <add>, %8, %cst_23 [1] : vector<8x8xf32> to vector<8xf32>
    %33 = vector.shape_cast %32 : vector<8xf32> to vector<8x1xf32>
    %34 = arith.addf %31, %33 : vector<8x1xf32>
    %c0_24 = arith.constant 0 : index
    %c0_25 = arith.constant 0 : index
    %35 = vector.load %arg9[%c0_24, %c0_25] : memref<8x1xf32, #tpu.memory_space<vmem>>, vector<8x1xf32>
    tpu.vector_store %arg9[%c0_24, %c0_25], %34 {strides = array<i32>} : memref<8x1xf32, #tpu.memory_space<vmem>>, vector<8x1xf32>,
    %c0_i32_26 = arith.constant 0 : i32
    %36 = arith.cmpi eq, %arg1, %c0_i32_26 : i32
    %37 = arith.extui %36 : i1 to i32
    %c0_i32_27 = arith.constant 0 : i32
    %38 = arith.cmpi ne, %37, %c0_i32_27 : i32
    scf.if %38 {
      %c0_28 = arith.constant 0 : index
      %c0_29 = arith.constant 0 : index
      %39 = vector.load %arg6[%c0_28, %c0_29] : memref<8x1xf32, #tpu.memory_space<vmem>>, vector<8x1xf32>
      %c0_30 = arith.constant 0 : index
      %c0_31 = arith.constant 0 : index
      %40 = vector.load %arg7[%c0_30, %c0_31] : memref<8x1xf32, #tpu.memory_space<vmem>>, vector<8x1xf32>
      %41 = math.log %40 : vector<8x1xf32>
      %42 = arith.addf %39, %41 : vector<8x1xf32>
      %c0_32 = arith.constant 0 : index
      %c0_33 = arith.constant 0 : index
      %43 = vector.load %arg9[%c0_32, %c0_33] : memref<8x1xf32, #tpu.memory_space<vmem>>, vector<8x1xf32>
      %44 = arith.mulf %42, %43 : vector<8x1xf32>
      %c0_34 = arith.constant 0 : index
      %c0_35 = arith.constant 0 : index
      %45 = vector.load %arg8[%c0_34, %c0_35] : memref<8x1xf32, #tpu.memory_space<vmem>>, vector<8x1xf32>
      %46 = arith.subf %44, %45 : vector<8x1xf32>
      %c0_36 = arith.constant 0 : index
      %c0_37 = arith.constant 0 : index
      %47 = vector.load %arg5[%c0_36, %c0_37] : memref<8x1xf32, #tpu.memory_space<vmem>>, vector<8x1xf32>
      tpu.vector_store %arg5[%c0_36, %c0_37], %46 {strides = array<i32>} : memref<8x1xf32, #tpu.memory_space<vmem>>, vector<8x1xf32>,
    } else {
    }
    return
  }
  func.func @transform_0(%arg0: i32, %arg1: i32) -> (i32, i32) {
    %c0_i32 = arith.constant 0 : i32
    %c0_i32_0 = arith.constant 0 : i32
    return %arg0, %c0_i32 : i32, i32
  }
  func.func @transform_1(%arg0: i32, %arg1: i32) -> (i32, i32) {
    %c0_i32 = arith.constant 0 : i32
    %c0_i32_0 = arith.constant 0 : i32
    return %arg1, %c0_i32 : i32, i32
  }
  func.func @transform_2(%arg0: i32, %arg1: i32) -> (i32, i32) {
    %c0_i32 = arith.constant 0 : i32
    return %arg0, %arg1 : i32, i32
  }
  func.func @transform_3(%arg0: i32, %arg1: i32) -> (i32, i32) {
    %c0_i32 = arith.constant 0 : i32
    %c0_i32_0 = arith.constant 0 : i32
    return %arg0, %c0_i32 : i32, i32
  }
}

</mosaic_0001>

<llo_original>
// kernel: tpu_custom_call.1
$region0: #{tpu_custom_call.1}
  #allocation0 [shape = 'u32[]', space=smem, size = 0x4, offset = 0x4, fixed_abs, tag = 'smem constant byte address 0x4 - core index']
  #allocation1 [shape = 'u32[72,128]{1,0:T(1,128)}', space=vmem, size = 0x9000, scoped, tag = 'internal scratch']
  #allocation2 [shape = 'f32[8,1]{1,0:T(8,128)}', space=vmem, size = 0x1000, scoped, tag = 'scratch operand']
  #allocation3 [shape = 'f32[8,1]{1,0:T(8,128)}', space=vmem, size = 0x1000, scoped, tag = 'scratch operand']
  #allocation4 [shape = 'f32[8,1]{1,0:T(8,128)}', space=vmem, size = 0x1000, scoped, tag = 'scratch operand']
  #allocation5 [shape = 'f32[8,1]{1,0:T(8,128)}', space=vmem, size = 0x1000, scoped, tag = 'scratch operand']
  %s0 = inlined_call_operand.hbm [shape: f32[8,64], index: 0, kind: input, shape index: {}]
  %s1 = inlined_call_operand.hbm [shape: f32[8,64], index: 1, kind: input, shape index: {}]
  %s2 = inlined_call_operand.hbm [shape: f32[8,8], index: 2, kind: input, shape index: {}]
  %s3 = inlined_call_operand.vmem [shape: f32[8,1], index: 3, kind: output, shape index: {}]
  %s4 = sld [smem:[#allocation0]]
  $region42: #{tpu_custom_call.1} parent=0
    _
  %s6 = ssub.s32 1, %s4
  %s7 = scalar_select 0, %s6, %s4
  $region1: #{tpu_custom_call.1} parent=0
    #allocation6 [shape = 'u8[4096]{0}', space=vmem, size = 0x1000, scoped, tag = 'input window, operand 0, single buffered']
    #allocation7 [shape = 's32[1]{0}', space=sflag, size = 0x4, scoped, tag = 'scoped memory for tpu_custom_call.1']
    #allocation8 [shape = 'u8[4096]{0}', space=vmem, size = 0x1000, scoped, tag = 'input window, operand 1, single buffered']
    #allocation9 [shape = 's32[1]{0}', space=sflag, size = 0x4, scoped, tag = 'scoped memory for tpu_custom_call.1']
    #allocation10 [shape = 'u8[4096]{0}', space=vmem, size = 0x1000, scoped, tag = 'input window, operand 2, single buffered']
    %8 = vsyncpa [#allocation7], 0
    %9 = vsyncpa [#allocation9], 0
    // Predicated region
    $region2: #{tpu_custom_call.1} parent=1 // pred_check
      _
    $region3: #{tpu_custom_call.1} parent=1 // pred_check_branch
      %11 = sbr.rel (0) target = $region5
    $region4: #{tpu_custom_call.1} parent=1 // pred_region
      %13 = vsyncadd [#allocation7], 0
      %s15 = sshll.u32 %s0, 4
      %s16 = int_to_ptr.hbm [resolvable:$true] %s15
      %s17 = sshll.u32 [#allocation6], 4
      %s18 = int_to_ptr.vmem [resolvable:$true] %s17
      %20 = dma.hbm_to_vmem [thread:$0]  %s16, 128, %s18, [#allocation7]
    $region5: #{tpu_custom_call.1} parent=1 // pred_fallthru
      _
    // Predicated region
    $region6: #{tpu_custom_call.1} parent=1 // pred_check
      _
    $region7: #{tpu_custom_call.1} parent=1 // pred_check_branch
      %22 = sbr.rel (0) target = $region9
    $region8: #{tpu_custom_call.1} parent=1 // pred_region
      %24 = vsyncadd [#allocation9], 0
      %s26 = sshll.u32 %s1, 4
      %s27 = int_to_ptr.hbm [resolvable:$true] %s26
      %s28 = sshll.u32 [#allocation8], 4
      %s29 = int_to_ptr.vmem [resolvable:$true] %s28
      %31 = dma.hbm_to_vmem [thread:$0]  %s27, 128, %s29, [#allocation9]
    $region9: #{tpu_custom_call.1} parent=1 // pred_fallthru
      _
    // Predicated region
    $region10: #{tpu_custom_call.1} parent=1 // pred_check
      _
    $region11: #{tpu_custom_call.1} parent=1 // pred_check_branch
      %33 = sbr.rel (0) target = $region13
    $region12: #{tpu_custom_call.1} parent=1 // pred_region
      %35 = vsyncadd [#allocation9], 0
      %s37 = sshll.u32 %s2, 4
      %s38 = int_to_ptr.hbm [resolvable:$true] %s37
      %s39 = sshll.u32 [#allocation10], 4
      %s40 = int_to_ptr.vmem [resolvable:$true] %s39
      %42 = dma.hbm_to_vmem [thread:$0]  %s38, 128, %s40, [#allocation9]
    $region13: #{tpu_custom_call.1} parent=1 // pred_fallthru
      _
    // Predicated region
    $region14: #{tpu_custom_call.1} parent=1 // pred_check
      _
    $region15: #{tpu_custom_call.1} parent=1 // pred_check_branch
      %44 = sbr.rel (0) target = $region17
    $region16: #{tpu_custom_call.1} parent=1 // pred_region
      %46 = dma.done [#allocation7], 128
    $region17: #{tpu_custom_call.1} parent=1 // pred_fallthru
      _
    // Predicated region
    $region18: #{tpu_custom_call.1} parent=1 // pred_check
      _
    $region19: #{tpu_custom_call.1} parent=1 // pred_check_branch
      %48 = sbr.rel (0) target = $region21
    $region20: #{tpu_custom_call.1} parent=1 // pred_region
      %50 = dma.done [#allocation9], 128
    $region21: #{tpu_custom_call.1} parent=1 // pred_fallthru
      _
    // Predicated region
    $region22: #{tpu_custom_call.1} parent=1 // pred_check
      _
    $region23: #{tpu_custom_call.1} parent=1 // pred_check_branch
      %52 = sbr.rel (0) target = $region25
    $region24: #{tpu_custom_call.1} parent=1 // pred_region
      %54 = dma.done [#allocation9], 128
    $region25: #{tpu_custom_call.1} parent=1 // pred_fallthru
      _
    %p55 = scmp.eq.s32.totalorder 0, 0
    // Predicated region
    $region26: #{tpu_custom_call.1} parent=1 // pred_check
      %p56 = pneg %p55
    $region27: #{tpu_custom_call.1} parent=1 // pred_check_branch
      %58 = sbr.rel (%p56) target = $region29
    $region28: #{tpu_custom_call.1} parent=1 // pred_region
      %vm59 = vcmask 7168
      %60 = vst.msk [vmem:[#allocation2] sm:$0xff] %vm59, -inf
      %61 = vst.msk [vmem:[#allocation3] sm:$0xff] %vm59, 0.0
      %62 = vst.msk [vmem:[#allocation4] sm:$0xff] %vm59, 0.0
      %63 = vst.msk [vmem:[#allocation5] sm:$0xff] %vm59, 0.0
    $region29: #{tpu_custom_call.1} parent=1 // pred_fallthru
      _
    %v64 = vld [vmem:[#allocation6] sm:$0xff]
    %v65 = vld [vmem:[#allocation8] sm:$0xff]
    %vm66 = vcmask 261120
    %v68 = vsel %vm66, %v64, 0
    %v71 = vsel %vm66, %v65, 0
    %73 = vmatpush.xpose.msra.mxu0 0.0
    %74 = vmatpush.xpose.msra.mxu0 0.0
    %75 = vmatpush.xpose.msra.mxu0 0.0
    %76 = vmatpush.xpose.msra.mxu0 0.0
    %77 = vmatpush.xpose.msra.mxu0 0.0
    %78 = vmatpush.xpose.msra.mxu0 0.0
    %79 = vmatpush.xpose.msra.mxu0 0.0
    %80 = vmatpush.xpose.msra.mxu0 0.0
    %81 = vmatpush.xpose.msra.mxu0 0.0
    %82 = vmatpush.xpose.msra.mxu0 0.0
    %83 = vmatpush.xpose.msra.mxu0 0.0
    %84 = vmatpush.xpose.msra.mxu0 0.0
    %85 = vmatpush.xpose.msra.mxu0 0.0
    %86 = vmatpush.xpose.msra.mxu0 0.0
    %87 = vmatpush.xpose.msra.mxu0 0.0
    %88 = vmatpush.xpose.msra.mxu0 %v71
    %89 = vmatmul.f32.gmra.mxu0 %v68
    %v90 = vpop.f32.mrf.mxu0
    %v91 = vadd.f32 0.0, %v90
    %92 = vdwg.mxu0
    %v93 = vld [vmem:[#allocation10] sm:$0xff]
    %v94 = vld [vmem:[#allocation2] sm:$0xff]
    %vm95 = vcmask 64512
    %v96 = vsel %vm95, %v91, -inf
    %97 = vmax.xlane.f32.xlu0 %v96
    %v98 = vpop.xlane.xlu0 %97
    %v99 = vmax.f32 %v94, %v98
    %v100 = vsub.f32 %v94, %v99
    %v101 = vmul.f32 %v100, 1.442695
    %v102 = vpow.pop %v101
    %v103 = vld [vmem:[#allocation3] sm:$0xff]
    %v104 = vmul.f32 %v102, %v103
    %106 = vset.pattern.permute.xlu0 0
    %107 = vperm.xlu0 %106, %v99
    %v108 = vpop.permute.xlu0 %107
    %v110 = vsub.f32 %v91, %v108
    %v111 = vmul.f32 %v110, 1.442695
    %v112 = vpow.pop %v111
    %v113 = vsel %vm95, %v112, 0.0
    %114 = vadd.xlane.f32.xlu0 %v113
    %v115 = vpop.xlane.xlu0 %114
    %v116 = vadd.f32 %v104, %v115
    %vm117 = vcmask 7168
    %118 = vst.msk [vmem:[#allocation3] sm:$0xff] %vm117, %v116
    %119 = vst.msk [vmem:[#allocation2] sm:$0xff] %vm117, %v99
    %v120 = vld [vmem:[#allocation4] sm:$0xff]
    %v121 = vmul.f32 %v93, %v91
    %v122 = vsel %vm95, %v121, 0.0
    %123 = vadd.xlane.f32.xlu0 %v122
    %v124 = vpop.xlane.xlu0 %123
    %v125 = vadd.f32 %v120, %v124
    %126 = vst.msk [vmem:[#allocation4] sm:$0xff] %vm117, %v125
    %v127 = vld [vmem:[#allocation5] sm:$0xff]
    %v128 = vsel %vm95, %v93, 0.0
    %129 = vadd.xlane.f32.xlu0 %v128
    %v130 = vpop.xlane.xlu0 %129
    %v131 = vadd.f32 %v127, %v130
    %132 = vst.msk [vmem:[#allocation5] sm:$0xff] %vm117, %v131
    // Predicated region
    $region30: #{tpu_custom_call.1} parent=1 // pred_check
      %p133 = pneg %p55
    $region31: #{tpu_custom_call.1} parent=1 // pred_check_branch
      %135 = sbr.rel (%p133) target = $region33
    $region32: #{tpu_custom_call.1} parent=1 // pred_region
      %v136 = vld [vmem:[#allocation2] sm:$0xff]
      %v137 = vld [vmem:[#allocation3] sm:$0xff]
      %v138 = vlog2.pop %v137
      %v139 = vmul.f32 %v138, 0.6931472
      %v140 = vadd.f32 %v136, %v139
      %v141 = vld [vmem:[#allocation5] sm:$0xff]
      %v142 = vmul.f32 %v140, %v141
      %v143 = vld [vmem:[#allocation4] sm:$0xff]
      %v144 = vsub.f32 %v142, %v143
      %145 = vst.msk [vmem:[%s3] sm:$0xff] %vm117, %v144
    $region33: #{tpu_custom_call.1} parent=1 // pred_fallthru
      _
    // Predicated region
    $region34: #{tpu_custom_call.1} parent=1 // pred_check
      _
    $region35: #{tpu_custom_call.1} parent=1 // pred_check_branch
      %147 = sbr.rel (0) target = $region37
    $region36: #{tpu_custom_call.1} parent=1 // pred_region
      _
    $region37: #{tpu_custom_call.1} parent=1 // pred_fallthru
      _
    // Predicated region
    $region38: #{tpu_custom_call.1} parent=1 // pred_check
      _
    $region39: #{tpu_custom_call.1} parent=1 // pred_check_branch
      %149 = sbr.rel (0) target = $region41
    $region40: #{tpu_custom_call.1} parent=1 // pred_region
      _
    $region41: #{tpu_custom_call.1} parent=1 // pred_fallthru
      _
    %150 = vsyncpa [#allocation7], 1
    %151 = vsyncpa [#allocation9], 1

</llo_original>
